<compile_context>
chip_gen: v7x
topology: tpu7x:2x2x1
jax: 0.10.0
libtpu: 0.0.40
codegen_flags: <defaults>
</compile_context>

<pallas_src>
import numpy as np
import jax
import jax.numpy as jnp
from jax.experimental import pallas as pl
from jax.experimental.pallas import tpu as pltpu

N_NODES = 5
IN_FEATS = 2
HIDDEN = 2
OUT_FEATS = 1
NUM_LAYERS = 5

PAD = 8   # node / feature padding: everything lives in a single (8, 8) f32 tile


def gnn_kernel(a_ref, x_ref, w_ref, b_ref, o_ref):
    # a_ref: (PAD, PAD)            zero-padded dense A_hat = D^-1/2 (A+I) D^-1/2
    # x_ref: (N_NODES, IN_FEATS)   raw node features (full-array block, no host padding)
    # w_ref: (NUM_LAYERS, 2, PAD)  w_ref[i, k, f] = W_i[k, f], zero-padded over f
    # b_ref: (NUM_LAYERS, 1, PAD)  b_ref[i, 0, f] = b_i[f],    zero-padded over f
    # o_ref: (PAD, PAD)            padded output; wrapper slices [:N_NODES, :OUT_FEATS]
    a = a_ref[...]
    # Hoist the per-source-node columns of A_hat (loop-invariant across all 5 layers).
    a_cols = [jnp.broadcast_to(a[:, s:s + 1], (PAD, PAD)) for s in range(N_NODES)]

    def gcn_layer(h, i, relu):
        wi = w_ref[i]                                              # (2, PAD)
        # X @ W as two rank-1 VPU FMAs (every layer has 2 input features).
        xw = h[:, 0:1] * wi[0:1, :] + h[:, 1:2] * wi[1:2, :]
        # A_hat @ (X W): contraction over the 5 real source nodes, on the VPU.
        # (Contraction depth is only 5, so an MXU matmul would just add latency.)
        agg = a_cols[0] * xw[0:1, :]
        for s in range(1, N_NODES):
            agg = agg + a_cols[s] * xw[s:s + 1, :]
        out = agg + b_ref[i]                                       # broadcast over nodes
        return jnp.maximum(out, 0.0) if relu else out

    h = x_ref[...]                    # (5, 2): only rows 0..4 / cols 0..1 are ever read
    h = gcn_layer(h, 0, True)
    h = gcn_layer(h, 1, True)
    h = gcn_layer(h, 2, True)
    h = gcn_layer(h, 3, True)
    h = gcn_layer(h, 4, False)
    o_ref[...] = h


def make_gnn_forward(a_hat, weights, biases):
    """Pads the fixed operands once (host-side numpy) and returns a jitted forward."""
    a_pad = np.zeros((PAD, PAD), np.float32)
    a_pad[:N_NODES, :N_NODES] = np.asarray(a_hat)

    w_stack = np.zeros((NUM_LAYERS, 2, PAD), np.float32)
    b_stack = np.zeros((NUM_LAYERS, 1, PAD), np.float32)
    for i, (w, b) in enumerate(zip(weights, biases)):
        fin, fout = w.shape
        w_stack[i, :fin, :fout] = np.asarray(w)
        b_stack[i, 0, :fout] = np.asarray(b)

    a_pad = jnp.asarray(a_pad)
    w_stack = jnp.asarray(w_stack)
    b_stack = jnp.asarray(b_stack)

    vmem = pl.BlockSpec(memory_space=pltpu.MemorySpace.VMEM)
    kernel_call = pl.pallas_call(
        gnn_kernel,
        out_shape=jax.ShapeDtypeStruct((PAD, PAD), jnp.float32),
        in_specs=[vmem] * 4,
        out_specs=vmem,
    )

    @jax.jit
    def forward(x):
        # Raw (5, 2) features go straight into the kernel; only the final slice
        # runs outside the pallas_call.
        out = kernel_call(a_pad, x, w_stack, b_stack)
        return out[:N_NODES, :OUT_FEATS]

    return forward


def build_gcn_norm_adjacency(edge_index, num_nodes):
    """Dense D^{-1/2} (A + I) D^{-1/2} with A[t, s] = 1 for edge s -> t (PyG gcn_norm)."""
    src = edge_index[0]
    dst = edge_index[1]
    loop = jnp.arange(num_nodes, dtype=src.dtype)
    src = jnp.concatenate([src, loop])
    dst = jnp.concatenate([dst, loop])
    deg = jnp.zeros((num_nodes,), jnp.float32).at[dst].add(1.0)
    deg_inv_sqrt = jnp.where(deg > 0, deg ** -0.5, 0.0)
    norm = deg_inv_sqrt[src] * deg_inv_sqrt[dst]
    a_hat = jnp.zeros((num_nodes, num_nodes), jnp.float32).at[dst, src].add(norm)
    return a_hat


def init_params(key):
    """Deterministic glorot-like weights and small biases for the 5 GCN layers."""
    dims = [(IN_FEATS, HIDDEN), (HIDDEN, HIDDEN), (HIDDEN, HIDDEN),
            (HIDDEN, HIDDEN), (HIDDEN, OUT_FEATS)]
    weights, biases = [], []
    for fin, fout in dims:
        key, kw, kb = jax.random.split(key, 3)
        scale = jnp.sqrt(2.0 / (fin + fout))
        weights.append(jax.random.normal(kw, (fin, fout), jnp.float32) * scale)
        biases.append(jax.random.normal(kb, (fout,), jnp.float32) * 0.1)
    return weights, biases


def gnn_forward_reference(a_hat, x, weights, biases):
    """float64 numpy reference of the 5-layer GCN forward."""
    a = np.asarray(a_hat, np.float64)
    h = np.asarray(x, np.float64)
    for i, (w, b) in enumerate(zip(weights, biases)):
        h = a @ (h @ np.asarray(w, np.float64)) + np.asarray(b, np.float64)
        if i < len(weights) - 1:
            h = np.maximum(h, 0.0)
    return h


if __name__ == "__main__":
    # Graph and node features from the module (fixed, built in-script).
    edge_index = jnp.array([[0, 1, 1, 2, 3],
                            [1, 2, 3, 4, 4]], dtype=jnp.int32)
    node_features = jnp.array([[10., 1.],
                               [20., 2.],
                               [15., 1.],
                               [10., 1.],
                               [5., 2.]], dtype=jnp.float32)

    weights, biases = init_params(jax.random.PRNGKey(0))
    a_hat = build_gcn_norm_adjacency(edge_index, N_NODES)

    gnn_forward = make_gnn_forward(a_hat, weights, biases)
    out = jax.block_until_ready(gnn_forward(node_features))

    ref = gnn_forward_reference(a_hat, node_features, weights, biases)
    assert out.shape == (N_NODES, OUT_FEATS)
    assert np.allclose(np.asarray(out), ref, rtol=1e-5, atol=1e-5)

    print("KERNEL_OK")
</pallas_src>

<mosaic_0001>
module attributes {stable_mosaic.version = 11 : i64} {
  func.func @gnn_kernel(%arg0: memref<8x8xf32, #tpu.memory_space<vmem>>, %arg1: memref<5x2xf32, #tpu.memory_space<vmem>>, %arg2: memref<5x2x8xf32, #tpu.memory_space<vmem>>, %arg3: memref<5x1x8xf32, #tpu.memory_space<vmem>>, %arg4: memref<8x8xf32, #tpu.memory_space<vmem>>) attributes {dimension_semantics = [], scalar_prefetch = 0 : i64, scratch_operands = 0 : i64, tpu.core_type = #tpu.core_type<tc>} {
    %c0 = arith.constant 0 : index
    %c0_0 = arith.constant 0 : index
    %0 = vector.load %arg0[%c0, %c0_0] : memref<8x8xf32, #tpu.memory_space<vmem>>, vector<8x8xf32>
    %1 = vector.extract_strided_slice %0 {offsets = [0, 0], sizes = [8, 1], strides = [1, 1]} : vector<8x8xf32> to vector<8x1xf32>
    %2 = vector.shape_cast %1 : vector<8x1xf32> to vector<8x1xf32>
    %3 = vector.broadcast %2 : vector<8x1xf32> to vector<8x8xf32>
    %4 = vector.extract_strided_slice %0 {offsets = [0, 1], sizes = [8, 1], strides = [1, 1]} : vector<8x8xf32> to vector<8x1xf32>
    %5 = vector.shape_cast %4 : vector<8x1xf32> to vector<8x1xf32>
    %6 = vector.broadcast %5 : vector<8x1xf32> to vector<8x8xf32>
    %7 = vector.extract_strided_slice %0 {offsets = [0, 2], sizes = [8, 1], strides = [1, 1]} : vector<8x8xf32> to vector<8x1xf32>
    %8 = vector.shape_cast %7 : vector<8x1xf32> to vector<8x1xf32>
    %9 = vector.broadcast %8 : vector<8x1xf32> to vector<8x8xf32>
    %10 = vector.extract_strided_slice %0 {offsets = [0, 3], sizes = [8, 1], strides = [1, 1]} : vector<8x8xf32> to vector<8x1xf32>
    %11 = vector.shape_cast %10 : vector<8x1xf32> to vector<8x1xf32>
    %12 = vector.broadcast %11 : vector<8x1xf32> to vector<8x8xf32>
    %13 = vector.extract_strided_slice %0 {offsets = [0, 4], sizes = [8, 1], strides = [1, 1]} : vector<8x8xf32> to vector<8x1xf32>
    %14 = vector.shape_cast %13 : vector<8x1xf32> to vector<8x1xf32>
    %15 = vector.broadcast %14 : vector<8x1xf32> to vector<8x8xf32>
    %c0_1 = arith.constant 0 : index
    %c0_2 = arith.constant 0 : index
    %16 = vector.load %arg1[%c0_1, %c0_2] : memref<5x2xf32, #tpu.memory_space<vmem>>, vector<5x2xf32>
    %c0_3 = arith.constant 0 : index
    %c0_4 = arith.constant 0 : index
    %c0_5 = arith.constant 0 : index
    %17 = vector.load %arg2[%c0_3, %c0_4, %c0_5] : memref<5x2x8xf32, #tpu.memory_space<vmem>>, vector<1x2x8xf32>
    %18 = vector.shape_cast %17 : vector<1x2x8xf32> to vector<2x8xf32>
    %19 = vector.extract_strided_slice %16 {offsets = [0, 0], sizes = [5, 1], strides = [1, 1]} : vector<5x2xf32> to vector<5x1xf32>
    %20 = vector.extract_strided_slice %18 {offsets = [0, 0], sizes = [1, 8], strides = [1, 1]} : vector<2x8xf32> to vector<1x8xf32>
    %21 = vector.broadcast %19 : vector<5x1xf32> to vector<5x8xf32>
    %22 = vector.broadcast %20 : vector<1x8xf32> to vector<5x8xf32>
    %23 = arith.mulf %21, %22 : vector<5x8xf32>
    %24 = vector.extract_strided_slice %16 {offsets = [0, 1], sizes = [5, 1], strides = [1, 1]} : vector<5x2xf32> to vector<5x1xf32>
    %25 = vector.extract_strided_slice %18 {offsets = [1, 0], sizes = [1, 8], strides = [1, 1]} : vector<2x8xf32> to vector<1x8xf32>
    %26 = vector.broadcast %24 : vector<5x1xf32> to vector<5x8xf32>
    %27 = vector.broadcast %25 : vector<1x8xf32> to vector<5x8xf32>
    %28 = arith.mulf %26, %27 : vector<5x8xf32>
    %29 = arith.addf %23, %28 : vector<5x8xf32>
    %30 = vector.extract_strided_slice %29 {offsets = [0, 0], sizes = [1, 8], strides = [1, 1]} : vector<5x8xf32> to vector<1x8xf32>
    %31 = vector.broadcast %30 : vector<1x8xf32> to vector<8x8xf32>
    %32 = arith.mulf %3, %31 : vector<8x8xf32>
    %33 = vector.extract_strided_slice %29 {offsets = [1, 0], sizes = [1, 8], strides = [1, 1]} : vector<5x8xf32> to vector<1x8xf32>
    %34 = vector.broadcast %33 : vector<1x8xf32> to vector<8x8xf32>
    %35 = arith.mulf %6, %34 : vector<8x8xf32>
    %36 = arith.addf %32, %35 : vector<8x8xf32>
    %37 = vector.extract_strided_slice %29 {offsets = [2, 0], sizes = [1, 8], strides = [1, 1]} : vector<5x8xf32> to vector<1x8xf32>
    %38 = vector.broadcast %37 : vector<1x8xf32> to vector<8x8xf32>
    %39 = arith.mulf %9, %38 : vector<8x8xf32>
    %40 = arith.addf %36, %39 : vector<8x8xf32>
    %41 = vector.extract_strided_slice %29 {offsets = [3, 0], sizes = [1, 8], strides = [1, 1]} : vector<5x8xf32> to vector<1x8xf32>
    %42 = vector.broadcast %41 : vector<1x8xf32> to vector<8x8xf32>
    %43 = arith.mulf %12, %42 : vector<8x8xf32>
    %44 = arith.addf %40, %43 : vector<8x8xf32>
    %45 = vector.extract_strided_slice %29 {offsets = [4, 0], sizes = [1, 8], strides = [1, 1]} : vector<5x8xf32> to vector<1x8xf32>
    %46 = vector.broadcast %45 : vector<1x8xf32> to vector<8x8xf32>
    %47 = arith.mulf %15, %46 : vector<8x8xf32>
    %48 = arith.addf %44, %47 : vector<8x8xf32>
    %c0_6 = arith.constant 0 : index
    %c0_7 = arith.constant 0 : index
    %c0_8 = arith.constant 0 : index
    %49 = vector.load %arg3[%c0_6, %c0_7, %c0_8] : memref<5x1x8xf32, #tpu.memory_space<vmem>>, vector<1x1x8xf32>
    %50 = vector.shape_cast %49 : vector<1x1x8xf32> to vector<1x8xf32>
    %51 = vector.broadcast %50 : vector<1x8xf32> to vector<8x8xf32>
    %52 = arith.addf %48, %51 : vector<8x8xf32>
    %cst = arith.constant 0.000000e+00 : f32
    %53 = vector.broadcast %cst : f32 to vector<8x8xf32>
    %54 = arith.maximumf %52, %53 : vector<8x8xf32>
    %c1 = arith.constant 1 : index
    %c0_9 = arith.constant 0 : index
    %c0_10 = arith.constant 0 : index
    %55 = vector.load %arg2[%c1, %c0_9, %c0_10] : memref<5x2x8xf32, #tpu.memory_space<vmem>>, vector<1x2x8xf32>
    %56 = vector.shape_cast %55 : vector<1x2x8xf32> to vector<2x8xf32>
    %57 = vector.extract_strided_slice %54 {offsets = [0, 0], sizes = [8, 1], strides = [1, 1]} : vector<8x8xf32> to vector<8x1xf32>
    %58 = vector.extract_strided_slice %56 {offsets = [0, 0], sizes = [1, 8], strides = [1, 1]} : vector<2x8xf32> to vector<1x8xf32>
    %59 = vector.broadcast %57 : vector<8x1xf32> to vector<8x8xf32>
    %60 = vector.broadcast %58 : vector<1x8xf32> to vector<8x8xf32>
    %61 = arith.mulf %59, %60 : vector<8x8xf32>
    %62 = vector.extract_strided_slice %54 {offsets = [0, 1], sizes = [8, 1], strides = [1, 1]} : vector<8x8xf32> to vector<8x1xf32>
    %63 = vector.extract_strided_slice %56 {offsets = [1, 0], sizes = [1, 8], strides = [1, 1]} : vector<2x8xf32> to vector<1x8xf32>
    %64 = vector.broadcast %62 : vector<8x1xf32> to vector<8x8xf32>
    %65 = vector.broadcast %63 : vector<1x8xf32> to vector<8x8xf32>
    %66 = arith.mulf %64, %65 : vector<8x8xf32>
    %67 = arith.addf %61, %66 : vector<8x8xf32>
    %68 = vector.extract_strided_slice %67 {offsets = [0, 0], sizes = [1, 8], strides = [1, 1]} : vector<8x8xf32> to vector<1x8xf32>
    %69 = vector.broadcast %68 : vector<1x8xf32> to vector<8x8xf32>
    %70 = arith.mulf %3, %69 : vector<8x8xf32>
    %71 = vector.extract_strided_slice %67 {offsets = [1, 0], sizes = [1, 8], strides = [1, 1]} : vector<8x8xf32> to vector<1x8xf32>
    %72 = vector.broadcast %71 : vector<1x8xf32> to vector<8x8xf32>
    %73 = arith.mulf %6, %72 : vector<8x8xf32>
    %74 = arith.addf %70, %73 : vector<8x8xf32>
    %75 = vector.extract_strided_slice %67 {offsets = [2, 0], sizes = [1, 8], strides = [1, 1]} : vector<8x8xf32> to vector<1x8xf32>
    %76 = vector.broadcast %75 : vector<1x8xf32> to vector<8x8xf32>
    %77 = arith.mulf %9, %76 : vector<8x8xf32>
    %78 = arith.addf %74, %77 : vector<8x8xf32>
    %79 = vector.extract_strided_slice %67 {offsets = [3, 0], sizes = [1, 8], strides = [1, 1]} : vector<8x8xf32> to vector<1x8xf32>
    %80 = vector.broadcast %79 : vector<1x8xf32> to vector<8x8xf32>
    %81 = arith.mulf %12, %80 : vector<8x8xf32>
    %82 = arith.addf %78, %81 : vector<8x8xf32>
    %83 = vector.extract_strided_slice %67 {offsets = [4, 0], sizes = [1, 8], strides = [1, 1]} : vector<8x8xf32> to vector<1x8xf32>
    %84 = vector.broadcast %83 : vector<1x8xf32> to vector<8x8xf32>
    %85 = arith.mulf %15, %84 : vector<8x8xf32>
    %86 = arith.addf %82, %85 : vector<8x8xf32>
    %c1_11 = arith.constant 1 : index
    %c0_12 = arith.constant 0 : index
    %c0_13 = arith.constant 0 : index
    %87 = vector.load %arg3[%c1_11, %c0_12, %c0_13] : memref<5x1x8xf32, #tpu.memory_space<vmem>>, vector<1x1x8xf32>
    %88 = vector.shape_cast %87 : vector<1x1x8xf32> to vector<1x8xf32>
    %89 = vector.broadcast %88 : vector<1x8xf32> to vector<8x8xf32>
    %90 = arith.addf %86, %89 : vector<8x8xf32>
    %cst_14 = arith.constant 0.000000e+00 : f32
    %91 = vector.broadcast %cst_14 : f32 to vector<8x8xf32>
    %92 = arith.maximumf %90, %91 : vector<8x8xf32>
    %c2 = arith.constant 2 : index
    %c0_15 = arith.constant 0 : index
    %c0_16 = arith.constant 0 : index
    %93 = vector.load %arg2[%c2, %c0_15, %c0_16] : memref<5x2x8xf32, #tpu.memory_space<vmem>>, vector<1x2x8xf32>
    %94 = vector.shape_cast %93 : vector<1x2x8xf32> to vector<2x8xf32>
    %95 = vector.extract_strided_slice %92 {offsets = [0, 0], sizes = [8, 1], strides = [1, 1]} : vector<8x8xf32> to vector<8x1xf32>
    %96 = vector.extract_strided_slice %94 {offsets = [0, 0], sizes = [1, 8], strides = [1, 1]} : vector<2x8xf32> to vector<1x8xf32>
    %97 = vector.broadcast %95 : vector<8x1xf32> to vector<8x8xf32>
    %98 = vector.broadcast %96 : vector<1x8xf32> to vector<8x8xf32>
    %99 = arith.mulf %97, %98 : vector<8x8xf32>
    %100 = vector.extract_strided_slice %92 {offsets = [0, 1], sizes = [8, 1], strides = [1, 1]} : vector<8x8xf32> to vector<8x1xf32>
    %101 = vector.extract_strided_slice %94 {offsets = [1, 0], sizes = [1, 8], strides = [1, 1]} : vector<2x8xf32> to vector<1x8xf32>
    %102 = vector.broadcast %100 : vector<8x1xf32> to vector<8x8xf32>
    %103 = vector.broadcast %101 : vector<1x8xf32> to vector<8x8xf32>
    %104 = arith.mulf %102, %103 : vector<8x8xf32>
    %105 = arith.addf %99, %104 : vector<8x8xf32>
    %106 = vector.extract_strided_slice %105 {offsets = [0, 0], sizes = [1, 8], strides = [1, 1]} : vector<8x8xf32> to vector<1x8xf32>
    %107 = vector.broadcast %106 : vector<1x8xf32> to vector<8x8xf32>
    %108 = arith.mulf %3, %107 : vector<8x8xf32>
    %109 = vector.extract_strided_slice %105 {offsets = [1, 0], sizes = [1, 8], strides = [1, 1]} : vector<8x8xf32> to vector<1x8xf32>
    %110 = vector.broadcast %109 : vector<1x8xf32> to vector<8x8xf32>
    %111 = arith.mulf %6, %110 : vector<8x8xf32>
    %112 = arith.addf %108, %111 : vector<8x8xf32>
    %113 = vector.extract_strided_slice %105 {offsets = [2, 0], sizes = [1, 8], strides = [1, 1]} : vector<8x8xf32> to vector<1x8xf32>
    %114 = vector.broadcast %113 : vector<1x8xf32> to vector<8x8xf32>
    %115 = arith.mulf %9, %114 : vector<8x8xf32>
    %116 = arith.addf %112, %115 : vector<8x8xf32>
    %117 = vector.extract_strided_slice %105 {offsets = [3, 0], sizes = [1, 8], strides = [1, 1]} : vector<8x8xf32> to vector<1x8xf32>
    %118 = vector.broadcast %117 : vector<1x8xf32> to vector<8x8xf32>
    %119 = arith.mulf %12, %118 : vector<8x8xf32>
    %120 = arith.addf %116, %119 : vector<8x8xf32>
    %121 = vector.extract_strided_slice %105 {offsets = [4, 0], sizes = [1, 8], strides = [1, 1]} : vector<8x8xf32> to vector<1x8xf32>
    %122 = vector.broadcast %121 : vector<1x8xf32> to vector<8x8xf32>
    %123 = arith.mulf %15, %122 : vector<8x8xf32>
    %124 = arith.addf %120, %123 : vector<8x8xf32>
    %c2_17 = arith.constant 2 : index
    %c0_18 = arith.constant 0 : index
    %c0_19 = arith.constant 0 : index
    %125 = vector.load %arg3[%c2_17, %c0_18, %c0_19] : memref<5x1x8xf32, #tpu.memory_space<vmem>>, vector<1x1x8xf32>
    %126 = vector.shape_cast %125 : vector<1x1x8xf32> to vector<1x8xf32>
    %127 = vector.broadcast %126 : vector<1x8xf32> to vector<8x8xf32>
    %128 = arith.addf %124, %127 : vector<8x8xf32>
    %cst_20 = arith.constant 0.000000e+00 : f32
    %129 = vector.broadcast %cst_20 : f32 to vector<8x8xf32>
    %130 = arith.maximumf %128, %129 : vector<8x8xf32>
    %c3 = arith.constant 3 : index
    %c0_21 = arith.constant 0 : index
    %c0_22 = arith.constant 0 : index
    %131 = vector.load %arg2[%c3, %c0_21, %c0_22] : memref<5x2x8xf32, #tpu.memory_space<vmem>>, vector<1x2x8xf32>
    %132 = vector.shape_cast %131 : vector<1x2x8xf32> to vector<2x8xf32>
    %133 = vector.extract_strided_slice %130 {offsets = [0, 0], sizes = [8, 1], strides = [1, 1]} : vector<8x8xf32> to vector<8x1xf32>
    %134 = vector.extract_strided_slice %132 {offsets = [0, 0], sizes = [1, 8], strides = [1, 1]} : vector<2x8xf32> to vector<1x8xf32>
    %135 = vector.broadcast %133 : vector<8x1xf32> to vector<8x8xf32>
    %136 = vector.broadcast %134 : vector<1x8xf32> to vector<8x8xf32>
    %137 = arith.mulf %135, %136 : vector<8x8xf32>
    %138 = vector.extract_strided_slice %130 {offsets = [0, 1], sizes = [8, 1], strides = [1, 1]} : vector<8x8xf32> to vector<8x1xf32>
    %139 = vector.extract_strided_slice %132 {offsets = [1, 0], sizes = [1, 8], strides = [1, 1]} : vector<2x8xf32> to vector<1x8xf32>
    %140 = vector.broadcast %138 : vector<8x1xf32> to vector<8x8xf32>
    %141 = vector.broadcast %139 : vector<1x8xf32> to vector<8x8xf32>
    %142 = arith.mulf %140, %141 : vector<8x8xf32>
    %143 = arith.addf %137, %142 : vector<8x8xf32>
    %144 = vector.extract_strided_slice %143 {offsets = [0, 0], sizes = [1, 8], strides = [1, 1]} : vector<8x8xf32> to vector<1x8xf32>
    %145 = vector.broadcast %144 : vector<1x8xf32> to vector<8x8xf32>
    %146 = arith.mulf %3, %145 : vector<8x8xf32>
    %147 = vector.extract_strided_slice %143 {offsets = [1, 0], sizes = [1, 8], strides = [1, 1]} : vector<8x8xf32> to vector<1x8xf32>
    %148 = vector.broadcast %147 : vector<1x8xf32> to vector<8x8xf32>
    %149 = arith.mulf %6, %148 : vector<8x8xf32>
    %150 = arith.addf %146, %149 : vector<8x8xf32>
    %151 = vector.extract_strided_slice %143 {offsets = [2, 0], sizes = [1, 8], strides = [1, 1]} : vector<8x8xf32> to vector<1x8xf32>
    %152 = vector.broadcast %151 : vector<1x8xf32> to vector<8x8xf32>
    %153 = arith.mulf %9, %152 : vector<8x8xf32>
    %154 = arith.addf %150, %153 : vector<8x8xf32>
    %155 = vector.extract_strided_slice %143 {offsets = [3, 0], sizes = [1, 8], strides = [1, 1]} : vector<8x8xf32> to vector<1x8xf32>
    %156 = vector.broadcast %155 : vector<1x8xf32> to vector<8x8xf32>
    %157 = arith.mulf %12, %156 : vector<8x8xf32>
    %158 = arith.addf %154, %157 : vector<8x8xf32>
    %159 = vector.extract_strided_slice %143 {offsets = [4, 0], sizes = [1, 8], strides = [1, 1]} : vector<8x8xf32> to vector<1x8xf32>
    %160 = vector.broadcast %159 : vector<1x8xf32> to vector<8x8xf32>
    %161 = arith.mulf %15, %160 : vector<8x8xf32>
    %162 = arith.addf %158, %161 : vector<8x8xf32>
    %c3_23 = arith.constant 3 : index
    %c0_24 = arith.constant 0 : index
    %c0_25 = arith.constant 0 : index
    %163 = vector.load %arg3[%c3_23, %c0_24, %c0_25] : memref<5x1x8xf32, #tpu.memory_space<vmem>>, vector<1x1x8xf32>
    %164 = vector.shape_cast %163 : vector<1x1x8xf32> to vector<1x8xf32>
    %165 = vector.broadcast %164 : vector<1x8xf32> to vector<8x8xf32>
    %166 = arith.addf %162, %165 : vector<8x8xf32>
    %cst_26 = arith.constant 0.000000e+00 : f32
    %167 = vector.broadcast %cst_26 : f32 to vector<8x8xf32>
    %168 = arith.maximumf %166, %167 : vector<8x8xf32>
    %c4 = arith.constant 4 : index
    %c0_27 = arith.constant 0 : index
    %c0_28 = arith.constant 0 : index
    %169 = vector.load %arg2[%c4, %c0_27, %c0_28] : memref<5x2x8xf32, #tpu.memory_space<vmem>>, vector<1x2x8xf32>
    %170 = vector.shape_cast %169 : vector<1x2x8xf32> to vector<2x8xf32>
    %171 = vector.extract_strided_slice %168 {offsets = [0, 0], sizes = [8, 1], strides = [1, 1]} : vector<8x8xf32> to vector<8x1xf32>
    %172 = vector.extract_strided_slice %170 {offsets = [0, 0], sizes = [1, 8], strides = [1, 1]} : vector<2x8xf32> to vector<1x8xf32>
    %173 = vector.broadcast %171 : vector<8x1xf32> to vector<8x8xf32>
    %174 = vector.broadcast %172 : vector<1x8xf32> to vector<8x8xf32>
    %175 = arith.mulf %173, %174 : vector<8x8xf32>
    %176 = vector.extract_strided_slice %168 {offsets = [0, 1], sizes = [8, 1], strides = [1, 1]} : vector<8x8xf32> to vector<8x1xf32>
    %177 = vector.extract_strided_slice %170 {offsets = [1, 0], sizes = [1, 8], strides = [1, 1]} : vector<2x8xf32> to vector<1x8xf32>
    %178 = vector.broadcast %176 : vector<8x1xf32> to vector<8x8xf32>
    %179 = vector.broadcast %177 : vector<1x8xf32> to vector<8x8xf32>
    %180 = arith.mulf %178, %179 : vector<8x8xf32>
    %181 = arith.addf %175, %180 : vector<8x8xf32>
    %182 = vector.extract_strided_slice %181 {offsets = [0, 0], sizes = [1, 8], strides = [1, 1]} : vector<8x8xf32> to vector<1x8xf32>
    %183 = vector.broadcast %182 : vector<1x8xf32> to vector<8x8xf32>
    %184 = arith.mulf %3, %183 : vector<8x8xf32>
    %185 = vector.extract_strided_slice %181 {offsets = [1, 0], sizes = [1, 8], strides = [1, 1]} : vector<8x8xf32> to vector<1x8xf32>
    %186 = vector.broadcast %185 : vector<1x8xf32> to vector<8x8xf32>
    %187 = arith.mulf %6, %186 : vector<8x8xf32>
    %188 = arith.addf %184, %187 : vector<8x8xf32>
    %189 = vector.extract_strided_slice %181 {offsets = [2, 0], sizes = [1, 8], strides = [1, 1]} : vector<8x8xf32> to vector<1x8xf32>
    %190 = vector.broadcast %189 : vector<1x8xf32> to vector<8x8xf32>
    %191 = arith.mulf %9, %190 : vector<8x8xf32>
    %192 = arith.addf %188, %191 : vector<8x8xf32>
    %193 = vector.extract_strided_slice %181 {offsets = [3, 0], sizes = [1, 8], strides = [1, 1]} : vector<8x8xf32> to vector<1x8xf32>
    %194 = vector.broadcast %193 : vector<1x8xf32> to vector<8x8xf32>
    %195 = arith.mulf %12, %194 : vector<8x8xf32>
    %196 = arith.addf %192, %195 : vector<8x8xf32>
    %197 = vector.extract_strided_slice %181 {offsets = [4, 0], sizes = [1, 8], strides = [1, 1]} : vector<8x8xf32> to vector<1x8xf32>
    %198 = vector.broadcast %197 : vector<1x8xf32> to vector<8x8xf32>
    %199 = arith.mulf %15, %198 : vector<8x8xf32>
    %200 = arith.addf %196, %199 : vector<8x8xf32>
    %c4_29 = arith.constant 4 : index
    %c0_30 = arith.constant 0 : index
    %c0_31 = arith.constant 0 : index
    %201 = vector.load %arg3[%c4_29, %c0_30, %c0_31] : memref<5x1x8xf32, #tpu.memory_space<vmem>>, vector<1x1x8xf32>
    %202 = vector.shape_cast %201 : vector<1x1x8xf32> to vector<1x8xf32>
    %203 = vector.broadcast %202 : vector<1x8xf32> to vector<8x8xf32>
    %204 = arith.addf %200, %203 : vector<8x8xf32>
    %c0_32 = arith.constant 0 : index
    %c0_33 = arith.constant 0 : index
    %205 = vector.load %arg4[%c0_32, %c0_33] : memref<8x8xf32, #tpu.memory_space<vmem>>, vector<8x8xf32>
    tpu.vector_store %arg4[%c0_32, %c0_33], %204 {strides = array<i32>} : memref<8x8xf32, #tpu.memory_space<vmem>>, vector<8x8xf32>,
    return
  }
}

</mosaic_0001>

<llo_original>
// kernel: forward.1
$region0: #{forward.1}
  #allocation0 [shape = 'u32[]', space=smem, size = 0x4, offset = 0x4, fixed_abs, tag = 'smem constant byte address 0x4 - core index']
  #allocation1 [shape = 'u32[144,128]{1,0:T(1,128)}', space=vmem, size = 0x12000, scoped, tag = 'internal scratch']
  %s0 = inlined_call_operand.hbm [shape: f32[8,8], index: 0, kind: input, shape index: {}]
  %s1 = inlined_call_operand.vmem [shape: f32[5,2], index: 1, kind: input, shape index: {}]
  %s2 = inlined_call_operand.vmem [shape: f32[5,2,8], index: 2, kind: input, shape index: {}]
  %s3 = inlined_call_operand.vmem [shape: f32[5,1,8], index: 3, kind: input, shape index: {}]
  %s4 = inlined_call_operand.vmem [shape: f32[8,8], index: 4, kind: output, shape index: {}]
  %s5 = sld [smem:[#allocation0]]
  $region30: #{forward.1} parent=0
    _
  %s7 = ssub.s32 1, %s5
  %s8 = scalar_select 0, %s7, %s5
  $region1: #{forward.1} parent=0
    #allocation2 [shape = 'u8[4096]{0}', space=vmem, size = 0x1000, scoped, tag = 'input window, operand 0, single buffered']
    #allocation3 [shape = 's32[1]{0}', space=sflag, size = 0x4, scoped, tag = 'scoped memory for forward.1']
    %9 = vsyncpa [#allocation3], 0
    // Predicated region
    $region2: #{forward.1} parent=1 // pred_check
      _
    $region3: #{forward.1} parent=1 // pred_check_branch
      %11 = sbr.rel (0) target = $region5
    $region4: #{forward.1} parent=1 // pred_region
      %s13 = ssub.s32 128, 128
      %14 = vsyncadd [#allocation3], %s13
      %s16 = sshll.u32 [#allocation2], 4
      %s17 = int_to_ptr.vmem [resolvable:$true] %s16
      %19 = dma.hbm_to_vmem [thread:$0]  %s0, 128, %s17, [#allocation3]
    $region5: #{forward.1} parent=1 // pred_fallthru
      _
    // Predicated region
    $region6: #{forward.1} parent=1 // pred_check
      _
    $region7: #{forward.1} parent=1 // pred_check_branch
      %21 = sbr.rel (0) target = $region9
    $region8: #{forward.1} parent=1 // pred_region
      _
    $region9: #{forward.1} parent=1 // pred_fallthru
      _
    // Predicated region
    $region10: #{forward.1} parent=1 // pred_check
      _
    $region11: #{forward.1} parent=1 // pred_check_branch
      %23 = sbr.rel (0) target = $region13
    $region12: #{forward.1} parent=1 // pred_region
      _
    $region13: #{forward.1} parent=1 // pred_fallthru
      _
    // Predicated region
    $region14: #{forward.1} parent=1 // pred_check
      _
    $region15: #{forward.1} parent=1 // pred_check_branch
      %25 = sbr.rel (0) target = $region17
    $region16: #{forward.1} parent=1 // pred_region
      _
    $region17: #{forward.1} parent=1 // pred_fallthru
      _
    // Predicated region
    $region18: #{forward.1} parent=1 // pred_check
      _
    $region19: #{forward.1} parent=1 // pred_check_branch
      %27 = sbr.rel (0) target = $region21
    $region20: #{forward.1} parent=1 // pred_region
      %28 = dma.done [#allocation3], 128
    $region21: #{forward.1} parent=1 // pred_fallthru
      _
    %v29 = vld [vmem:[#allocation2] sm:$0xff]
    %31 = vset.pattern.permute.xlu0 0
    %32 = vperm.xlu0 %31, %v29
    %v33 = vpop.permute.xlu0 %32
    %35 = vset.pattern.permute.xlu0 1
    %36 = vperm.xlu0 %35, %v29
    %v37 = vpop.permute.xlu0 %36
    %39 = vset.pattern.permute.xlu0 2
    %40 = vperm.xlu0 %39, %v29
    %v41 = vpop.permute.xlu0 %40
    %43 = vset.pattern.permute.xlu0 3
    %44 = vperm.xlu0 %43, %v29
    %v45 = vpop.permute.xlu0 %44
    %47 = vset.pattern.permute.xlu0 4
    %48 = vperm.xlu0 %47, %v29
    %v49 = vpop.permute.xlu0 %48
    %v51 = vld [vmem:[%s1] sm:$0x1f]
    %v52 = vld [vmem:[%s2] sm:$0x3]
    %54 = vset.pattern.permute.xlu0 0
    %55 = vperm.xlu0 %54, %v51
    %v56 = vpop.permute.xlu0 %55
    %v58 = vlaneseq
    %v59 = vshrl.u32 %v58, 7
    %v60 = vsub.s32 0, %v59
    %v61 = vrot.slane %v52, %v60
    %v62 = vmul.f32 %v56, %v61
    %63 = vset.pattern.permute.xlu0 1
    %64 = vperm.xlu0 %63, %v51
    %v65 = vpop.permute.xlu0 %64
    %v67 = vlaneseq
    %v68 = vshrl.u32 %v67, 7
    %v69 = vsub.s32 1, %v68
    %v70 = vrot.slane %v52, %v69
    %v71 = vmul.f32 %v65, %v70
    %v72 = vadd.f32 %v62, %v71
    %v73 = vlaneseq
    %v74 = vshrl.u32 %v73, 7
    %v75 = vsub.s32 0, %v74
    %v76 = vrot.slane %v72, %v75
    %v77 = vmul.f32 %v33, %v76
    %v78 = vlaneseq
    %v79 = vshrl.u32 %v78, 7
    %v80 = vsub.s32 1, %v79
    %v81 = vrot.slane %v72, %v80
    %v82 = vmul.f32 %v37, %v81
    %v83 = vadd.f32 %v77, %v82
    %v84 = vlaneseq
    %v85 = vshrl.u32 %v84, 7
    %v86 = vsub.s32 2, %v85
    %v87 = vrot.slane %v72, %v86
    %v88 = vmul.f32 %v41, %v87
    %v89 = vadd.f32 %v83, %v88
    %v90 = vlaneseq
    %v91 = vshrl.u32 %v90, 7
    %v92 = vsub.s32 3, %v91
    %v93 = vrot.slane %v72, %v92
    %v94 = vmul.f32 %v45, %v93
    %v95 = vadd.f32 %v89, %v94
    %v96 = vlaneseq
    %v97 = vshrl.u32 %v96, 7
    %v98 = vsub.s32 4, %v97
    %v99 = vrot.slane %v72, %v98
    %v100 = vmul.f32 %v49, %v99
    %v101 = vadd.f32 %v95, %v100
    %v102 = vld [vmem:[%s3] sm:$0x1]
    %v104 = vlaneseq
    %v105 = vshrl.u32 %v104, 7
    %v106 = vsub.s32 0, %v105
    %v107 = vrot.slane %v102, %v106
    %v109 = vadd.f32 %v101, %v107
    %v110 = vmax.f32 %v109, 0.0
    %s111 = scalar_lea.vmem %s2, 2
    %v112 = vld [vmem:[%s111] sm:$0x3]
    %114 = vset.pattern.permute.xlu0 0
    %115 = vperm.xlu0 %114, %v110
    %v116 = vpop.permute.xlu0 %115
    %v118 = vlaneseq
    %v119 = vshrl.u32 %v118, 7
    %v120 = vsub.s32 0, %v119
    %v121 = vrot.slane %v112, %v120
    %v122 = vmul.f32 %v116, %v121
    %123 = vset.pattern.permute.xlu0 1
    %124 = vperm.xlu0 %123, %v110
    %v125 = vpop.permute.xlu0 %124
    %v127 = vlaneseq
    %v128 = vshrl.u32 %v127, 7
    %v129 = vsub.s32 1, %v128
    %v130 = vrot.slane %v112, %v129
    %v131 = vmul.f32 %v125, %v130
    %v132 = vadd.f32 %v122, %v131
    %v133 = vlaneseq
    %v134 = vshrl.u32 %v133, 7
    %v135 = vsub.s32 0, %v134
    %v136 = vrot.slane %v132, %v135
    %v137 = vmul.f32 %v33, %v136
    %v138 = vlaneseq
    %v139 = vshrl.u32 %v138, 7
    %v140 = vsub.s32 1, %v139
    %v141 = vrot.slane %v132, %v140
    %v142 = vmul.f32 %v37, %v141
    %v143 = vadd.f32 %v137, %v142
    %v144 = vlaneseq
    %v145 = vshrl.u32 %v144, 7
    %v146 = vsub.s32 2, %v145
    %v147 = vrot.slane %v132, %v146
    %v148 = vmul.f32 %v41, %v147
    %v149 = vadd.f32 %v143, %v148
    %v150 = vlaneseq
    %v151 = vshrl.u32 %v150, 7
    %v152 = vsub.s32 3, %v151
    %v153 = vrot.slane %v132, %v152
    %v154 = vmul.f32 %v45, %v153
    %v155 = vadd.f32 %v149, %v154
    %v156 = vlaneseq
    %v157 = vshrl.u32 %v156, 7
    %v158 = vsub.s32 4, %v157
    %v159 = vrot.slane %v132, %v158
    %v160 = vmul.f32 %v49, %v159
    %v161 = vadd.f32 %v155, %v160
    %s162 = scalar_lea.vmem %s3, 1
    %v163 = vld [vmem:[%s162] sm:$0x1]
    %v165 = vlaneseq
    %v166 = vshrl.u32 %v165, 7
    %v167 = vsub.s32 0, %v166
    %v168 = vrot.slane %v163, %v167
    %v170 = vadd.f32 %v161, %v168
    %v171 = vmax.f32 %v170, 0.0
    %s172 = scalar_lea.vmem %s2, 4
    %v173 = vld [vmem:[%s172] sm:$0x3]
    %175 = vset.pattern.permute.xlu0 0
    %176 = vperm.xlu0 %175, %v171
    %v177 = vpop.permute.xlu0 %176
    %v179 = vlaneseq
    %v180 = vshrl.u32 %v179, 7
    %v181 = vsub.s32 0, %v180
    %v182 = vrot.slane %v173, %v181
    %v183 = vmul.f32 %v177, %v182
    %184 = vset.pattern.permute.xlu0 1
    %185 = vperm.xlu0 %184, %v171
    %v186 = vpop.permute.xlu0 %185
    %v188 = vlaneseq
    %v189 = vshrl.u32 %v188, 7
    %v190 = vsub.s32 1, %v189
    %v191 = vrot.slane %v173, %v190
    %v192 = vmul.f32 %v186, %v191
    %v193 = vadd.f32 %v183, %v192
    %v194 = vlaneseq
    %v195 = vshrl.u32 %v194, 7
    %v196 = vsub.s32 0, %v195
    %v197 = vrot.slane %v193, %v196
    %v198 = vmul.f32 %v33, %v197
    %v199 = vlaneseq
    %v200 = vshrl.u32 %v199, 7
    %v201 = vsub.s32 1, %v200
    %v202 = vrot.slane %v193, %v201
    %v203 = vmul.f32 %v37, %v202
    %v204 = vadd.f32 %v198, %v203
    %v205 = vlaneseq
    %v206 = vshrl.u32 %v205, 7
    %v207 = vsub.s32 2, %v206
    %v208 = vrot.slane %v193, %v207
    %v209 = vmul.f32 %v41, %v208
    %v210 = vadd.f32 %v204, %v209
    %v211 = vlaneseq
    %v212 = vshrl.u32 %v211, 7
    %v213 = vsub.s32 3, %v212
    %v214 = vrot.slane %v193, %v213
    %v215 = vmul.f32 %v45, %v214
    %v216 = vadd.f32 %v210, %v215
    %v217 = vlaneseq
    %v218 = vshrl.u32 %v217, 7
    %v219 = vsub.s32 4, %v218
    %v220 = vrot.slane %v193, %v219
    %v221 = vmul.f32 %v49, %v220
    %v222 = vadd.f32 %v216, %v221
    %s223 = scalar_lea.vmem %s3, 2
    %v224 = vld [vmem:[%s223] sm:$0x1]
    %v226 = vlaneseq
    %v227 = vshrl.u32 %v226, 7
    %v228 = vsub.s32 0, %v227
    %v229 = vrot.slane %v224, %v228
    %v231 = vadd.f32 %v222, %v229
    %v232 = vmax.f32 %v231, 0.0
    %s233 = scalar_lea.vmem %s2, 6
    %v234 = vld [vmem:[%s233] sm:$0x3]
    %236 = vset.pattern.permute.xlu0 0
    %237 = vperm.xlu0 %236, %v232
    %v238 = vpop.permute.xlu0 %237
    %v240 = vlaneseq
    %v241 = vshrl.u32 %v240, 7
    %v242 = vsub.s32 0, %v241
    %v243 = vrot.slane %v234, %v242
    %v244 = vmul.f32 %v238, %v243
    %245 = vset.pattern.permute.xlu0 1
    %246 = vperm.xlu0 %245, %v232
    %v247 = vpop.permute.xlu0 %246
    %v249 = vlaneseq
    %v250 = vshrl.u32 %v249, 7
    %v251 = vsub.s32 1, %v250
    %v252 = vrot.slane %v234, %v251
    %v253 = vmul.f32 %v247, %v252
    %v254 = vadd.f32 %v244, %v253
    %v255 = vlaneseq
    %v256 = vshrl.u32 %v255, 7
    %v257 = vsub.s32 0, %v256
    %v258 = vrot.slane %v254, %v257
    %v259 = vmul.f32 %v33, %v258
    %v260 = vlaneseq
    %v261 = vshrl.u32 %v260, 7
    %v262 = vsub.s32 1, %v261
    %v263 = vrot.slane %v254, %v262
    %v264 = vmul.f32 %v37, %v263
    %v265 = vadd.f32 %v259, %v264
    %v266 = vlaneseq
    %v267 = vshrl.u32 %v266, 7
    %v268 = vsub.s32 2, %v267
    %v269 = vrot.slane %v254, %v268
    %v270 = vmul.f32 %v41, %v269
    %v271 = vadd.f32 %v265, %v270
    %v272 = vlaneseq
    %v273 = vshrl.u32 %v272, 7
    %v274 = vsub.s32 3, %v273
    %v275 = vrot.slane %v254, %v274
    %v276 = vmul.f32 %v45, %v275
    %v277 = vadd.f32 %v271, %v276
    %v278 = vlaneseq
    %v279 = vshrl.u32 %v278, 7
    %v280 = vsub.s32 4, %v279
    %v281 = vrot.slane %v254, %v280
    %v282 = vmul.f32 %v49, %v281
    %v283 = vadd.f32 %v277, %v282
    %s284 = scalar_lea.vmem %s3, 3
    %v285 = vld [vmem:[%s284] sm:$0x1]
    %v287 = vlaneseq
    %v288 = vshrl.u32 %v287, 7
    %v289 = vsub.s32 0, %v288
    %v290 = vrot.slane %v285, %v289
    %v292 = vadd.f32 %v283, %v290
    %v293 = vmax.f32 %v292, 0.0
    %s294 = scalar_lea.vmem %s2, 8
    %v295 = vld [vmem:[%s294] sm:$0x3]
    %297 = vset.pattern.permute.xlu0 0
    %298 = vperm.xlu0 %297, %v293
    %v299 = vpop.permute.xlu0 %298
    %v301 = vlaneseq
    %v302 = vshrl.u32 %v301, 7
    %v303 = vsub.s32 0, %v302
    %v304 = vrot.slane %v295, %v303
    %v305 = vmul.f32 %v299, %v304
    %306 = vset.pattern.permute.xlu0 1
    %307 = vperm.xlu0 %306, %v293
    %v308 = vpop.permute.xlu0 %307
    %v310 = vlaneseq
    %v311 = vshrl.u32 %v310, 7
    %v312 = vsub.s32 1, %v311
    %v313 = vrot.slane %v295, %v312
    %v314 = vmul.f32 %v308, %v313
    %v315 = vadd.f32 %v305, %v314
    %v316 = vlaneseq
    %v317 = vshrl.u32 %v316, 7
    %v318 = vsub.s32 0, %v317
    %v319 = vrot.slane %v315, %v318
    %v320 = vmul.f32 %v33, %v319
    %v321 = vlaneseq
    %v322 = vshrl.u32 %v321, 7
    %v323 = vsub.s32 1, %v322
    %v324 = vrot.slane %v315, %v323
    %v325 = vmul.f32 %v37, %v324
    %v326 = vadd.f32 %v320, %v325
    %v327 = vlaneseq
    %v328 = vshrl.u32 %v327, 7
    %v329 = vsub.s32 2, %v328
    %v330 = vrot.slane %v315, %v329
    %v331 = vmul.f32 %v41, %v330
    %v332 = vadd.f32 %v326, %v331
    %v333 = vlaneseq
    %v334 = vshrl.u32 %v333, 7
    %v335 = vsub.s32 3, %v334
    %v336 = vrot.slane %v315, %v335
    %v337 = vmul.f32 %v45, %v336
    %v338 = vadd.f32 %v332, %v337
    %v339 = vlaneseq
    %v340 = vshrl.u32 %v339, 7
    %v341 = vsub.s32 4, %v340
    %v342 = vrot.slane %v315, %v341
    %v343 = vmul.f32 %v49, %v342
    %v344 = vadd.f32 %v338, %v343
    %s345 = scalar_lea.vmem %s3, 4
    %v346 = vld [vmem:[%s345] sm:$0x1]
    %v348 = vlaneseq
    %v349 = vshrl.u32 %v348, 7
    %v350 = vsub.s32 0, %v349
    %v351 = vrot.slane %v346, %v350
    %v353 = vadd.f32 %v344, %v351
    %vm354 = vcmask 64512
    %355 = vst.msk [vmem:[%s4] sm:$0xff] %vm354, %v353
    // Predicated region
    $region22: #{forward.1} parent=1 // pred_check
      _
    $region23: #{forward.1} parent=1 // pred_check_branch
      %357 = sbr.rel (0) target = $region25
    $region24: #{forward.1} parent=1 // pred_region
      _
    $region25: #{forward.1} parent=1 // pred_fallthru
      _
    // Predicated region
    $region26: #{forward.1} parent=1 // pred_check
      _
    $region27: #{forward.1} parent=1 // pred_check_branch
      %359 = sbr.rel (0) target = $region29
    $region28: #{forward.1} parent=1 // pred_region
      _
    $region29: #{forward.1} parent=1 // pred_fallthru
      _
    %360 = vsyncpa [#allocation3], 1

</llo_original>
